<compile_context>
chip_gen: v6e
topology: v6e:2x2x1
jax: 0.10.0
libtpu: 0.0.40
codegen_flags: <defaults>
</compile_context>

<pallas_src>
import jax
import jax.numpy as jnp
from jax.experimental import pallas as pl
from jax.experimental.pallas import tpu as pltpu


def film_kernel(gamma_ref, beta_ref, x_ref, o_ref):
    # gamma/beta: (tB, 1, n), x/o: (tB, tS, n). Implicit broadcast over tS.
    o_ref[...] = (x_ref[...] * gamma_ref[...] + beta_ref[...]).astype(o_ref.dtype)


def _round_up(a, b):
    return pl.cdiv(a, b) * b


def fuse_film_params(wg, bg, wb, bb):
    """Pre-fuse the two Linear layers' parameters.

    Do this ONCE at parameter-prep time, not per forward call, so no (m, 2n)
    weight copy is re-materialized in HBM on every call.

    wg, wb: (m, n)  pre-transposed Linear weights (i.e. W.T)
    bg, bb: (n,)
    """
    w_cat = jnp.concatenate([wg, wb], axis=1).astype(jnp.float32)   # (m, 2n)
    b_cat = jnp.concatenate([bg, bb], axis=0).astype(jnp.float32)   # (2n,)
    return w_cat, b_cat


def _film_impl(x, latent, w_cat, b_cat, *, vmem_budget_bytes=12 * 1024 * 1024):
    """FiLM forward.

    x:      (B, S, n)
    latent: (B, m)
    w_cat:  (m, 2n)  fused [Wg | Wb]   (from fuse_film_params)
    b_cat:  (2n,)    fused [bg ; bb]
    """
    B, S, n = x.shape
    itemsize = jnp.dtype(x.dtype).itemsize

    # --- Hoisted gamma/beta: one fused f32 matmul, cast once to x.dtype -----
    gb = (latent.astype(jnp.float32) @ w_cat + b_cat).astype(x.dtype)   # (B, 2n)
    gamma = gb[:, :n].reshape(B, 1, n)
    beta = gb[:, n:].reshape(B, 1, n)

    # --- Lane dim: pad n to a multiple of 128 so stores stay unmasked -------
    LANE = 128
    n_pad = _round_up(n, LANE)
    if n_pad != n:
        pad = [(0, 0), (0, 0), (0, n_pad - n)]
        x = jnp.pad(x, pad)
        gamma = jnp.pad(gamma, pad)
        beta = jnp.pad(beta, pad)

    # --- Sublane multiple is dtype dependent (8 f32, 16 bf16, 32 int8) ------
    SUBLANE = max(8, 32 // itemsize)
    s_pad = _round_up(S, SUBLANE)

    # --- Tile sizing: double-buffered x + out tiles -> 4 tile copies live ---
    bytes_per_row = n_pad * itemsize
    rows_budget = max(
        SUBLANE, (vmem_budget_bytes // (4 * bytes_per_row)) // SUBLANE * SUBLANE
    )

    if s_pad >= rows_budget or B == 1:
        # Sequence alone fills a tile: tile over S within each batch.
        tB = 1
        tS = min(rows_budget, s_pad)
    else:
        # Full sequence fits: co-tile the batch so each grid step moves a
        # large contiguous slab (amortizes the ~0.35 us per-step overhead).
        tS = s_pad
        tB = max(1, min(B, rows_budget // s_pad))

    # --- Keep the grid >= ~8 steps for v7x's two TensorCores, but never -----
    # --- shrink tiles below the ~512-row HBM roofline plateau.          -----
    MIN_STEPS, MIN_ROWS = 8, 512

    def n_steps(tb, ts):
        return pl.cdiv(B, tb) * pl.cdiv(S, ts)

    while n_steps(tB, tS) < MIN_STEPS and tB > 1 and (tB // 2) * tS >= MIN_ROWS:
        tB = max(1, tB // 2)
    while (n_steps(tB, tS) < MIN_STEPS and tS > SUBLANE
           and tB * _round_up(max(tS // 2, SUBLANE), SUBLANE) >= MIN_ROWS):
        tS = _round_up(max(tS // 2, SUBLANE), SUBLANE)

    grid = (pl.cdiv(B, tB), pl.cdiv(S, tS))

    cost = pl.CostEstimate(
        flops=2 * B * S * n_pad,
        transcendentals=0,
        bytes_accessed=2 * B * S * n_pad * itemsize + 2 * B * n_pad * itemsize,
    )

    out = pl.pallas_call(
        film_kernel,
        out_shape=jax.ShapeDtypeStruct((B, S, n_pad), x.dtype),
        grid_spec=pltpu.PrefetchScalarGridSpec(
            num_scalar_prefetch=0,
            grid=grid,
            in_specs=[
                pl.BlockSpec((tB, 1, n_pad), lambda b, s: (b, 0, 0)),    # gamma
                pl.BlockSpec((tB, 1, n_pad), lambda b, s: (b, 0, 0)),    # beta
                pl.BlockSpec((tB, tS, n_pad), lambda b, s: (b, s, 0)),   # x
            ],
            out_specs=pl.BlockSpec((tB, tS, n_pad), lambda b, s: (b, s, 0)),
        ),
        compiler_params=pltpu.CompilerParams(
            dimension_semantics=("parallel", "parallel"),
            vmem_limit_bytes=32 * 1024 * 1024,   # safe on v7x's 64 MiB part
        ),
        cost_estimate=cost,
    )(gamma, beta, x)

    if n_pad != n:
        out = out[:, :, :n]
    return out


film = jax.jit(_film_impl, static_argnames=("vmem_budget_bytes",))


if __name__ == "__main__":
    # Small, deterministic shapes: B=2, S=8 (sequence / spatial), m=32, n=128.
    B, S, m, n = 2, 8, 32, 128
    key = jax.random.PRNGKey(0)
    kx, kl, kwg, kbg, kwb, kbb = jax.random.split(key, 6)

    x = jax.random.normal(kx, (B, S, n), dtype=jnp.float32)
    latent = jax.random.normal(kl, (B, m), dtype=jnp.float32)

    # Deterministic "Linear" parameters (stored pre-transposed as (m, n)).
    scale = 1.0 / jnp.sqrt(jnp.float32(m))
    wg = jax.random.uniform(kwg, (m, n), jnp.float32, -scale, scale)
    bg = jax.random.uniform(kbg, (n,), jnp.float32, -scale, scale)
    wb = jax.random.uniform(kwb, (m, n), jnp.float32, -scale, scale)
    bb = jax.random.uniform(kbb, (n,), jnp.float32, -scale, scale)

    # Fuse the two Linear layers once (parameter-prep time, not per call).
    w_cat, b_cat = fuse_film_params(wg, bg, wb, bb)

    out = film(x, latent, w_cat, b_cat)
    out = jax.block_until_ready(out)

    # Pure-JAX reference check.
    gamma_ref = latent @ wg + bg
    beta_ref = latent @ wb + bb
    ref = gamma_ref[:, None, :] * x + beta_ref[:, None, :]
    assert out.shape == (B, S, n)
    assert jnp.allclose(out, ref, atol=1e-5, rtol=1e-5)

    print("KERNEL_OK")
</pallas_src>

<mosaic_0001>
module attributes {stable_mosaic.version = 11 : i64} {
  func.func @film_kernel(%arg0: i32, %arg1: i32, %arg2: memref<2x1x128xf32, #tpu.memory_space<vmem>>, %arg3: memref<2x1x128xf32, #tpu.memory_space<vmem>>, %arg4: memref<2x8x128xf32, #tpu.memory_space<vmem>>, %arg5: memref<2x8x128xf32, #tpu.memory_space<vmem>>) attributes {dimension_semantics = [#tpu.dimension_semantics<parallel>, #tpu.dimension_semantics<parallel>], iteration_bounds = array<i64: 1, 1>, scalar_prefetch = 0 : i64, scratch_operands = 0 : i64, tpu.core_type = #tpu.core_type<tc>, window_params = [{transform_indices = @transform_0, window_bounds = array<i64: 2, 1, 128>}, {transform_indices = @transform_1, window_bounds = array<i64: 2, 1, 128>}, {transform_indices = @transform_2, window_bounds = array<i64: 2, 8, 128>}, {transform_indices = @transform_3, window_bounds = array<i64: 2, 8, 128>}]} {
    %c0 = arith.constant 0 : index
    %c0_0 = arith.constant 0 : index
    %c0_1 = arith.constant 0 : index
    %0 = vector.load %arg4[%c0, %c0_0, %c0_1] : memref<2x8x128xf32, #tpu.memory_space<vmem>>, vector<2x8x128xf32>
    %c0_2 = arith.constant 0 : index
    %c0_3 = arith.constant 0 : index
    %c0_4 = arith.constant 0 : index
    %1 = vector.load %arg2[%c0_2, %c0_3, %c0_4] : memref<2x1x128xf32, #tpu.memory_space<vmem>>, vector<2x1x128xf32>
    %2 = vector.broadcast %1 : vector<2x1x128xf32> to vector<2x8x128xf32>
    %3 = arith.mulf %0, %2 : vector<2x8x128xf32>
    %c0_5 = arith.constant 0 : index
    %c0_6 = arith.constant 0 : index
    %c0_7 = arith.constant 0 : index
    %4 = vector.load %arg3[%c0_5, %c0_6, %c0_7] : memref<2x1x128xf32, #tpu.memory_space<vmem>>, vector<2x1x128xf32>
    %5 = vector.broadcast %4 : vector<2x1x128xf32> to vector<2x8x128xf32>
    %6 = arith.addf %3, %5 : vector<2x8x128xf32>
    %c0_8 = arith.constant 0 : index
    %c0_9 = arith.constant 0 : index
    %c0_10 = arith.constant 0 : index
    %7 = vector.load %arg5[%c0_8, %c0_9, %c0_10] : memref<2x8x128xf32, #tpu.memory_space<vmem>>, vector<2x8x128xf32>
    tpu.vector_store %arg5[%c0_8, %c0_9, %c0_10], %6 {strides = array<i32>} : memref<2x8x128xf32, #tpu.memory_space<vmem>>, vector<2x8x128xf32>,
    return
  }
  func.func @transform_0(%arg0: i32, %arg1: i32) -> (i32, i32, i32) {
    %c0_i32 = arith.constant 0 : i32
    %c0_i32_0 = arith.constant 0 : i32
    %c0_i32_1 = arith.constant 0 : i32
    return %arg0, %c0_i32, %c0_i32_0 : i32, i32, i32
  }
  func.func @transform_1(%arg0: i32, %arg1: i32) -> (i32, i32, i32) {
    %c0_i32 = arith.constant 0 : i32
    %c0_i32_0 = arith.constant 0 : i32
    %c0_i32_1 = arith.constant 0 : i32
    return %arg0, %c0_i32, %c0_i32_0 : i32, i32, i32
  }
  func.func @transform_2(%arg0: i32, %arg1: i32) -> (i32, i32, i32) {
    %c0_i32 = arith.constant 0 : i32
    %c0_i32_0 = arith.constant 0 : i32
    return %arg0, %arg1, %c0_i32 : i32, i32, i32
  }
  func.func @transform_3(%arg0: i32, %arg1: i32) -> (i32, i32, i32) {
    %c0_i32 = arith.constant 0 : i32
    %c0_i32_0 = arith.constant 0 : i32
    return %arg0, %arg1, %c0_i32 : i32, i32, i32
  }
}

</mosaic_0001>

<llo_original>
// kernel: _film_impl.1
$region0: #{_film_impl.1}
  #allocation0 [shape = 'u32[]', space=smem, size = 0x4, offset = 0x4, fixed_abs, tag = 'smem constant byte address 0x4 - core index']
  #allocation1 [shape = 'u32[144,128]{1,0:T(1,128)}', space=vmem, size = 0x12000, scoped, tag = 'internal scratch']
  %s0 = inlined_call_operand.vmem [shape: f32[2,1,128], index: 0, kind: input, shape index: {}]
  %s1 = inlined_call_operand.vmem [shape: f32[2,1,128], index: 1, kind: input, shape index: {}]
  %s2 = inlined_call_operand.vmem [shape: f32[2,8,128], index: 2, kind: input, shape index: {}]
  %s3 = inlined_call_operand.hbm [shape: f32[2,8,128], index: 3, kind: output, shape index: {}]
  %s4 = sld [smem:[#allocation0]]
  $region22: #{_film_impl.1} parent=0
    _
  %s6 = ssub.s32 1, %s4
  %s7 = scalar_select 0, %s6, %s4
  $region1: #{_film_impl.1} parent=0
    #allocation2 [shape = 'u8[8192]{0}', space=vmem, size = 0x2000, scoped, tag = 'output window, operand 0, single buffered']
    #allocation3 [shape = 's32[1]{0}', space=sflag, size = 0x4, scoped, tag = 'scoped memory for _film_impl.1']
    %8 = vsyncpa [#allocation3], 0
    // Predicated region
    $region2: #{_film_impl.1} parent=1 // pred_check
      _
    $region3: #{_film_impl.1} parent=1 // pred_check_branch
      %10 = sbr.rel (0) target = $region5
    $region4: #{_film_impl.1} parent=1 // pred_region
      _
    $region5: #{_film_impl.1} parent=1 // pred_fallthru
      _
    // Predicated region
    $region6: #{_film_impl.1} parent=1 // pred_check
      _
    $region7: #{_film_impl.1} parent=1 // pred_check_branch
      %12 = sbr.rel (0) target = $region9
    $region8: #{_film_impl.1} parent=1 // pred_region
      _
    $region9: #{_film_impl.1} parent=1 // pred_fallthru
      _
    // Predicated region
    $region10: #{_film_impl.1} parent=1 // pred_check
      _
    $region11: #{_film_impl.1} parent=1 // pred_check_branch
      %14 = sbr.rel (0) target = $region13
    $region12: #{_film_impl.1} parent=1 // pred_region
      _
    $region13: #{_film_impl.1} parent=1 // pred_fallthru
      _
    %v15 = vld [vmem:[%s2] sm:$0xff]
    %v16 = vld [vmem:[%s2 + $0x8] sm:$0xff]
    %v17 = vld [vmem:[%s0] sm:$0x1]
    %v18 = vld [vmem:[%s0 + $0x1] sm:$0x1]
    %v21 = vlaneseq
    %v22 = vshrl.u32 %v21, 7
    %v23 = vsub.s32 0, %v22
    %v24 = vrot.slane %v17, %v23
    %v25 = vlaneseq
    %v26 = vshrl.u32 %v25, 7
    %v27 = vsub.s32 0, %v26
    %v28 = vrot.slane %v18, %v27
    %v31 = vmul.f32 %v15, %v24
    %v32 = vmul.f32 %v16, %v28
    %v33 = vld [vmem:[%s1] sm:$0x1]
    %v34 = vld [vmem:[%s1 + $0x1] sm:$0x1]
    %v37 = vlaneseq
    %v38 = vshrl.u32 %v37, 7
    %v39 = vsub.s32 0, %v38
    %v40 = vrot.slane %v33, %v39
    %v41 = vlaneseq
    %v42 = vshrl.u32 %v41, 7
    %v43 = vsub.s32 0, %v42
    %v44 = vrot.slane %v34, %v43
    %v47 = vadd.f32 %v31, %v40
    %v48 = vadd.f32 %v32, %v44
    %49 = vst [vmem:[#allocation2] sm:$0xff] %v47
    %50 = vst [vmem:[#allocation2 + $0x8] sm:$0xff] %v48
    // Predicated region
    $region14: #{_film_impl.1} parent=1 // pred_check
      _
    $region15: #{_film_impl.1} parent=1 // pred_check_branch
      %52 = sbr.rel (0) target = $region17
    $region16: #{_film_impl.1} parent=1 // pred_region
      %s54 = ssub.s32 256, 256
      %55 = vsyncadd [#allocation3], %s54
      %s56 = sshll.u32 [#allocation2], 4
      %s57 = int_to_ptr.vmem [resolvable:$true] %s56
      %62 = dma.vmem_to_hbm [thread:$0]  %s57, 256, %s3, [#allocation3], 128, 128, 8
    $region17: #{_film_impl.1} parent=1 // pred_fallthru
      _
    // Predicated region
    $region18: #{_film_impl.1} parent=1 // pred_check
      _
    $region19: #{_film_impl.1} parent=1 // pred_check_branch
      %64 = sbr.rel (0) target = $region21
    $region20: #{_film_impl.1} parent=1 // pred_region
      %65 = dma.done [#allocation3], 256
    $region21: #{_film_impl.1} parent=1 // pred_fallthru
      _
    %66 = vsyncpa [#allocation3], 1

</llo_original>
